<compile_context>
chip_gen: v5e
topology: v5e:2x2
jax: 0.10.0
libtpu: 0.0.40
codegen_flags: <defaults>
</compile_context>

<pallas_src>
import functools

import jax
import jax.numpy as jnp
from jax.experimental import pallas as pl
from jax.experimental.pallas import tpu as pltpu


def _round_up(a, b):
    return (a + b - 1) // b * b


def _cdiv(a, b):
    return (a + b - 1) // b


def _vmem_budget():
    """Returns (tile budget, physical capacity) in bytes, ~25% headroom."""
    try:
        cap = int(pltpu.get_tpu_info().vmem_capacity_bytes)
    except Exception:                       # conservative fallback: v7x (64 MiB)
        cap = 64 * 1024 * 1024
    return (cap * 3) // 4, cap


# -----------------------------------------------------------------------------
# Kernel bodies
# -----------------------------------------------------------------------------
def _resident_kernel(x_ref, w_ref, b_ref, o_ref, *, tm):
    """x fully VMEM-resident; weight streamed from HBM exactly once.

    x_ref: (N_pad, D)  whole batch (constant (0,0) block -> single DMA)
    w_ref: (D, tn)     weight tile in (D, num_class) layout -> plain jnp.dot
    b_ref: (1, tn)     f32 bias row tile
    o_ref: (tm, tn)    output tile for (batch block i, class block j)
    """
    i = pl.program_id(1)                      # inner (batch) grid axis
    row0 = pl.multiple_of(i * tm, 16)         # tm is a multiple of 16
    xs = x_ref[pl.ds(row0, tm), :]
    acc = jnp.dot(xs, w_ref[...], preferred_element_type=jnp.float32)
    o_ref[...] = (acc + b_ref[...]).astype(o_ref.dtype)


def _streaming_kernel(x_ref, w_ref, b_ref, o_ref, acc_ref):
    """Tiled path with optional K(D) reduction grid axis (axis 2).

    x_ref: (tm, d_blk); w_ref: (d_blk, tn); b_ref: (1, tn); o_ref: (tm, tn)
    acc_ref: (tm, tn) f32 VMEM accumulator, persistent across the k axis.
    """
    k = pl.program_id(2)

    @pl.when(k == 0)
    def _():
        acc_ref[...] = jnp.zeros_like(acc_ref)

    acc_ref[...] += jnp.dot(x_ref[...], w_ref[...],
                            preferred_element_type=jnp.float32)

    @pl.when(k == pl.num_programs(2) - 1)
    def _():
        o_ref[...] = (acc_ref[...] + b_ref[...]).astype(o_ref.dtype)


# -----------------------------------------------------------------------------
# Wrapper
# -----------------------------------------------------------------------------
def lsh_sampled_layer_eval_forward(x, weight, bias, *,
                                   compute_dtype=jnp.bfloat16,
                                   out_dtype=jnp.float32,
                                   _force_streaming=False):
    """Pallas implementation of  x @ weight.T + bias.squeeze().

    x:      (N, D) f32;  weight: (num_class, D) f32;  bias: (num_class, 1) f32
    returns (N, num_class) in out_dtype (default f32).

    compute_dtype=jnp.float32 gives f32-level parity with the PyTorch forward
    (slower MXU path); the bf16 default halves HBM traffic, accumulates in f32.
    """
    N, D = x.shape
    num_class = weight.shape[0]
    assert weight.shape == (num_class, D)
    assert bias.shape == (num_class, 1)

    budget, vmem_cap = _vmem_budget()
    in_sz = jnp.dtype(compute_dtype).itemsize
    out_sz = jnp.dtype(out_dtype).itemsize

    C128 = _round_up(num_class, 128)
    N16 = _round_up(N, 16)            # bf16 sublane packing (superset of f32's 8)

    # --- class tile: lane-dense and big enough that each weight DMA moves
    # --- >= ~512 KiB; the (D, tn) layout keeps row-strided segments >= 1 KiB.
    tn = _round_up(max(512, _cdiv(512 * 1024, D * in_sz)), 128)
    tn = min(tn, C128, 8192)

    # --- x residency decision: bytes-based, not a fixed N cutoff -------------
    x_bytes = N16 * D * in_sz
    x_resident = (not _force_streaming) and (2 * x_bytes <= budget // 2)

    d_blk = D
    D_pad = D

    if x_resident:
        tm = min(N16, 512)                          # output-tile rows

        def fits_a(tm_, tn_):
            return (2 * x_bytes                     # resident x (2x: safe bound)
                    + 2 * D * tn_ * in_sz           # weight, double-buffered
                    + 2 * tn_ * 4                   # bias
                    + 2 * tm_ * tn_ * out_sz        # output, double-buffered
                    ) <= budget

        while not fits_a(tm, tn):
            if tn > 512:
                tn = max(512, (tn // 2) // 128 * 128)
            elif tm > 16:
                tm = max(16, (tm // 2) // 16 * 16)
            elif tn > 128:
                tn = max(128, (tn // 2) // 128 * 128)
            else:
                x_resident = False                  # give up residency
                break

    if not x_resident:
        # Streaming path: tile x too, optionally K-block D on tight VMEM (v7x).
        tn = _round_up(max(512, _cdiv(512 * 1024, D * in_sz)), 128)
        tn = min(tn, C128, 8192)
        tm = min(512, N16)
        d_blk = D

        def fits_b(tm_, tn_, d_):
            return (2 * tm_ * d_ * in_sz            # x tile, double-buffered
                    + 2 * d_ * tn_ * in_sz          # weight tile
                    + 2 * tn_ * 4                   # bias
                    + 2 * tm_ * tn_ * out_sz        # output tile
                    + tm_ * tn_ * 4                 # f32 accumulator scratch
                    ) <= budget

        while not fits_b(tm, tn, d_blk):
            if tn > 512:
                tn = max(512, (tn // 2) // 128 * 128)
            elif tm > 128:
                tm = max(128, (tm // 2) // 16 * 16)
            elif tn > 128:
                tn = max(128, (tn // 2) // 128 * 128)
            elif d_blk > 128:
                d_blk = max(128, (d_blk // 2) // 128 * 128)   # K-block D
            else:
                break
        D_pad = D if d_blk == D else _round_up(D, d_blk)

    N_pad = _round_up(N16, tm)
    C_pad = _round_up(num_class, tn)
    n_i, n_j = N_pad // tm, C_pad // tn
    nk = D_pad // d_blk

    # --- megacore (v7x: 2 TCs): keep >= 2 parallel grid steps ----------------
    if x_resident and n_i * n_j == 1 and C128 >= 256:
        tn = _round_up(_cdiv(C128, 2), 128)
        C_pad = _round_up(num_class, tn)
        n_j = C_pad // tn

    # --- host-side prep (cheap glue, fused by XLA) ----------------------------
    x_c = x.astype(compute_dtype)
    w_t = weight.T.astype(compute_dtype)       # (D, num_class): transpose fused with cast
    b_row = bias.reshape(1, num_class).astype(jnp.float32)

    if N_pad != N:
        x_c = jnp.pad(x_c, ((0, N_pad - N), (0, 0)))
    if D_pad != D:
        x_c = jnp.pad(x_c, ((0, 0), (0, D_pad - D)))
        w_t = jnp.pad(w_t, ((0, D_pad - D), (0, 0)))
    if C_pad != num_class:
        w_t = jnp.pad(w_t, ((0, 0), (0, C_pad - num_class)))
        b_row = jnp.pad(b_row, ((0, 0), (0, C_pad - num_class)))

    # --- grid / BlockSpecs -----------------------------------------------------
    if x_resident:
        # grid = (class j, batch i). x has a constant block index (one DMA
        # total); the weight block (0, j) is constant across the inner i axis
        # (one DMA per class tile). Both operands stream from HBM exactly once.
        grid = (n_j, n_i)
        kernel = functools.partial(_resident_kernel, tm=tm)
        in_specs = [
            pl.BlockSpec((N_pad, D_pad), lambda j, i: (0, 0)),   # whole x, resident
            pl.BlockSpec((D_pad, tn),    lambda j, i: (0, j)),   # weight tile
            pl.BlockSpec((1, tn),        lambda j, i: (0, j)),   # bias row
        ]
        out_spec = pl.BlockSpec((tm, tn), lambda j, i: (i, j))
        scratch = []
        semantics = ("parallel", "parallel")
        x_reads, w_reads = 1, 1
    else:
        # Traffic-aware ordering: stream the larger operand once, re-stream
        # the smaller. (With nk > 1 some re-streaming is unavoidable.)
        weight_once = C_pad >= N_pad
        kernel = _streaming_kernel
        if weight_once:
            grid = (n_j, n_i, nk)
            x_map = lambda j, i, k: (i, k)
            w_map = lambda j, i, k: (k, j)
            b_map = lambda j, i, k: (0, j)
            o_map = lambda j, i, k: (i, j)
            x_reads = n_j
            w_reads = 1 if nk == 1 else n_i
        else:
            grid = (n_i, n_j, nk)
            x_map = lambda i, j, k: (i, k)
            w_map = lambda i, j, k: (k, j)
            b_map = lambda i, j, k: (0, j)
            o_map = lambda i, j, k: (i, j)
            w_reads = n_i
            x_reads = 1 if nk == 1 else n_j
        in_specs = [
            pl.BlockSpec((tm, d_blk), x_map),
            pl.BlockSpec((d_blk, tn), w_map),
            pl.BlockSpec((1, tn),     b_map),
        ]
        out_spec = pl.BlockSpec((tm, tn), o_map)
        scratch = [pltpu.VMEM((tm, tn), jnp.float32)]
        semantics = ("parallel", "parallel", "arbitrary")

    cost = pl.CostEstimate(
        flops=2 * N_pad * D_pad * C_pad,
        transcendentals=0,
        bytes_accessed=int(x_reads * N_pad * D_pad * in_sz
                           + w_reads * C_pad * D_pad * in_sz
                           + C_pad * 4
                           + N_pad * C_pad * out_sz),
    )

    out = pl.pallas_call(
        kernel,
        out_shape=jax.ShapeDtypeStruct((N_pad, C_pad), out_dtype),
        grid_spec=pltpu.PrefetchScalarGridSpec(
            num_scalar_prefetch=0,
            grid=grid,
            in_specs=in_specs,
            out_specs=out_spec,
            scratch_shapes=scratch,
        ),
        compiler_params=pltpu.CompilerParams(
            dimension_semantics=semantics,
            vmem_limit_bytes=int((vmem_cap * 7) // 8),   # < physical, > our budget
        ),
        cost_estimate=cost,
    )(x_c, w_t, b_row)

    if N_pad != N or C_pad != num_class:
        out = out[:N, :num_class]
    return out


if __name__ == "__main__":
    # Small shapes consistent with the module:
    #   layer_size (D) = 128, num_class = 256, batch N = 16
    N, D, num_class = 16, 128, 256

    key = jax.random.PRNGKey(0)
    k_x, k_w = jax.random.split(key)

    # Deterministic parameter init mirroring init_weights():
    #   weight ~ U(-0.05, 0.05), bias = 0   (shapes: (num_class, D), (num_class, 1))
    initrange = 0.05
    weight = jax.random.uniform(k_w, (num_class, D), jnp.float32,
                                minval=-initrange, maxval=initrange)
    bias = jnp.zeros((num_class, 1), jnp.float32)
    x = jax.random.normal(k_x, (N, D), jnp.float32)

    # High-precision reference for the eval-mode forward semantics.
    ref = jnp.matmul(x, weight.T, precision=jax.lax.Precision.HIGHEST) + bias.squeeze()

    # (1) Default path: bf16 streaming, f32 accumulate, x VMEM-resident.
    out = jax.block_until_ready(lsh_sampled_layer_eval_forward(x, weight, bias))
    assert out.shape == (N, num_class)
    assert jnp.allclose(out, ref, atol=2e-2, rtol=2e-2)

    # (2) f32-parity opt-in (addresses the bf16 numerics concern).
    out_f32 = jax.block_until_ready(
        lsh_sampled_layer_eval_forward(x, weight, bias,
                                       compute_dtype=jnp.float32))
    assert jnp.allclose(out_f32, ref, atol=2e-2, rtol=2e-2)

    # (3) Streaming / accumulator path (used when x cannot be VMEM-resident).
    out_stream = jax.block_until_ready(
        lsh_sampled_layer_eval_forward(x, weight, bias, _force_streaming=True))
    assert jnp.allclose(out_stream, ref, atol=2e-2, rtol=2e-2)

    print("KERNEL_OK")
</pallas_src>

<mosaic_0001>
module attributes {stable_mosaic.version = 11 : i64} {
  func.func @_resident_kernel(%arg0: i32, %arg1: i32, %arg2: memref<16x128xbf16, #tpu.memory_space<vmem>>, %arg3: memref<128x128xbf16, #tpu.memory_space<vmem>>, %arg4: memref<1x128xf32, #tpu.memory_space<vmem>>, %arg5: memref<16x128xf32, #tpu.memory_space<vmem>>) attributes {dimension_semantics = [#tpu.dimension_semantics<parallel>, #tpu.dimension_semantics<parallel>], iteration_bounds = array<i64: 2, 1>, scalar_prefetch = 0 : i64, scratch_operands = 0 : i64, tpu.core_type = #tpu.core_type<tc>, window_params = [{pipeline_mode = #tpu.pipeline_mode<synchronous>, transform_indices = @transform_0, window_bounds = array<i64: 16, 128>}, {transform_indices = @transform_1, window_bounds = array<i64: 128, 128>}, {transform_indices = @transform_2, window_bounds = array<i64: 1, 128>}, {transform_indices = @transform_3, window_bounds = array<i64: 16, 128>}]} {
    %c16_i32 = arith.constant 16 : i32
    %0 = arith.muli %arg1, %c16_i32 : i32
    %1 = tpu.assume_multiple %0, 16 : i32
    %2 = arith.index_cast %1 : i32 to index
    %c0 = arith.constant 0 : index
    %3 = vector.load %arg2[%2, %c0] : memref<16x128xbf16, #tpu.memory_space<vmem>>, vector<16x128xbf16>
    %c0_0 = arith.constant 0 : index
    %c0_1 = arith.constant 0 : index
    %4 = vector.load %arg3[%c0_0, %c0_1] : memref<128x128xbf16, #tpu.memory_space<vmem>>, vector<128x128xbf16>
    %cst = arith.constant dense<0.000000e+00> : vector<16x128xf32>
    %5 = tpu.matmul %3, %4, %cst {dimension_numbers = #tpu.dot_dimension_numbers<[1], [0], [0], [1], [0, 0, 1, 1], [], []>} : vector<16x128xbf16>, vector<128x128xbf16>, vector<16x128xf32> -> vector<16x128xf32>
    %c0_2 = arith.constant 0 : index
    %c0_3 = arith.constant 0 : index
    %6 = vector.load %arg4[%c0_2, %c0_3] : memref<1x128xf32, #tpu.memory_space<vmem>>, vector<1x128xf32>
    %7 = vector.broadcast %6 : vector<1x128xf32> to vector<16x128xf32>
    %8 = arith.addf %5, %7 : vector<16x128xf32>
    %c0_4 = arith.constant 0 : index
    %c0_5 = arith.constant 0 : index
    %9 = vector.load %arg5[%c0_4, %c0_5] : memref<16x128xf32, #tpu.memory_space<vmem>>, vector<16x128xf32>
    tpu.vector_store %arg5[%c0_4, %c0_5], %8 {strides = array<i32>} : memref<16x128xf32, #tpu.memory_space<vmem>>, vector<16x128xf32>,
    return
  }
  func.func @transform_0(%arg0: i32, %arg1: i32) -> (i32, i32) {
    %c0_i32 = arith.constant 0 : i32
    %c0_i32_0 = arith.constant 0 : i32
    %c0_i32_1 = arith.constant 0 : i32
    return %c0_i32, %c0_i32_0 : i32, i32
  }
  func.func @transform_1(%arg0: i32, %arg1: i32) -> (i32, i32) {
    %c0_i32 = arith.constant 0 : i32
    %c0_i32_0 = arith.constant 0 : i32
    return %c0_i32, %arg0 : i32, i32
  }
  func.func @transform_2(%arg0: i32, %arg1: i32) -> (i32, i32) {
    %c0_i32 = arith.constant 0 : i32
    %c0_i32_0 = arith.constant 0 : i32
    return %c0_i32, %arg0 : i32, i32
  }
  func.func @transform_3(%arg0: i32, %arg1: i32) -> (i32, i32) {
    %c0_i32 = arith.constant 0 : i32
    return %arg1, %arg0 : i32, i32
  }
}

</mosaic_0001>

<llo_original>
// kernel: tpu_custom_call.1
$region0: #{tpu_custom_call.1}
  #allocation0 [shape = 'u32[]', space=smem, size = 0x4, offset = 0x4, fixed_abs, tag = 'smem constant byte address 0x4 - core index']
  #allocation1 [shape = 'u32[72,128]{1,0:T(1,128)}', space=vmem, size = 0x9000, scoped, tag = 'internal scratch']
  %s0 = inlined_call_operand.hbm [shape: bf16[16,128], index: 0, kind: input, shape index: {}]
  %s1 = inlined_call_operand.hbm [shape: bf16[128,256], index: 1, kind: input, shape index: {}]
  %s2 = inlined_call_operand.hbm [shape: f32[1,256], index: 2, kind: input, shape index: {}]
  %s3 = inlined_call_operand.hbm [shape: f32[16,256], index: 3, kind: output, shape index: {}]
  %s4 = sld [smem:[#allocation0]]
  $region57: #{tpu_custom_call.1} parent=0
    _
  %s6 = ssub.s32 1, %s4
  %s7 = scalar_select 0, %s6, %s4
  $region1: #{tpu_custom_call.1} parent=0
    #allocation2 [shape = 'u8[4096]{0}', space=vmem, size = 0x1000, scoped, tag = 'input window, operand 0, single buffered']
    #allocation3 [shape = 's32[2]{0}', space=sflag, size = 0x8, scoped, tag = 'scoped memory for tpu_custom_call.1']
    #allocation4 [shape = 's32[2]{0}', space=sflag, size = 0x8, scoped, tag = 'scoped memory for tpu_custom_call.1']
    #allocation5 [shape = 'u8[65536]{0}', space=vmem, size = 0x10000, scoped, tag = 'input window, operand 1']
    #allocation6 [shape = 's32[2]{0}', space=sflag, size = 0x8, scoped, tag = 'scoped memory for tpu_custom_call.1']
    #allocation7 [shape = 'u8[1024]{0}', space=vmem, size = 0x400, scoped, tag = 'input window, operand 2']
    #allocation8 [shape = 'u8[16384]{0}', space=vmem, size = 0x4000, scoped, tag = 'output window, operand 0']
    %8 = vsyncpa [#allocation3], 0
    %9 = vsyncpa [#allocation6], 0
    %s10 = scalar_lea.sflag [#allocation6], 1
    %11 = vsyncpa %s10, 0
    %12 = vsyncpa [#allocation4], 0
    %s13 = scalar_lea.sflag [#allocation4], 1
    %14 = vsyncpa %s13, 0
    loop: start=0, step=1, limit=4
    $region2: #{tpu_custom_call.1} parent=1 // loop_pre_header
      _
    $region3: #{tpu_custom_call.1} parent=1 // loop_header
      %s16 = sphi 0, %s20
      %p17 = scmp.ge.s32.totalorder %s16, 4
      %s23 = sphi 0, %s35
      %s24 = sphi 0, %s31
      %s25 = sphi 0, %s23
      %s26 = sphi 0, %s24
      %s27 = sphi 0, %s25
      %s28 = sphi 0, %s26
      %s36 = sphi 0, %s36
      %s38 = sphi 0, %s36
      %s39 = sphi 0, %s38
      %s53 = sphi 0, %s39
      %s59 = sphi 0, %s61
      %s62 = sphi 0, %s59
      %s63 = sphi 0, %s62
      %s79 = sphi 0, %s63
      %s85 = sphi 0, %s87
      %s88 = sphi 0, %s85
      %s89 = sphi 0, %s88
      %s105 = sphi 0, %s89
      %s113 = sphi 0, %s115
      %s116 = sphi 0, %s113
      %s117 = sphi 0, %s116
      %s133 = sphi 0, %s117
    $region4: #{tpu_custom_call.1} parent=1 // loop_header_branch
      %19 = sbr.rel (%p17) target = $region8
    $region5: #{tpu_custom_call.1} parent=1 // loop_body
      %s21 = ssub.s32 %s16, 1
      %s22 = ssub.s32 %s16, 2
      %s29 = sadd.s32 1, %s24
      %p30 = scmp.ge.s32.totalorder %s29, 1
      %s31 = scalar_select %p30, 0, %s29
      %s32 = sadd.s32 1, %s23
      %s33 = scalar_select %p30, %s32, %s23
      %p34 = scmp.ge.s32.totalorder %s33, 2
      %s35 = scalar_select %p34, 0, %s33
      %s37 = sadd.s32 %s36, 1
      %p40 = scmp.eq.s32.totalorder %s16, 1
      %p41 = scmp.ne.s32.totalorder %s36, %s38
      %p42 = scmp.eq.s32.totalorder %s16, 0
      %p43 = por %p41, %p42
      %p44 = scmp.ne.s32.totalorder %s36, %s38
      %p45 = scmp.eq.s32.totalorder %s21, 1
      %p46 = por %p44, %p45
      %p47 = scmp.ne.s32.totalorder %s38, %s39
      %p48 = scmp.eq.s32.totalorder %s21, 0
      %p49 = por %p47, %p48
      %p50 = scmp.ne.s32.totalorder %s38, %s39
      %p51 = scmp.eq.s32.totalorder %s22, 1
      %p52 = por %p50, %p51
      %p54 = scmp.ne.s32.totalorder %s39, %s53
      %p55 = scmp.eq.s32.totalorder %s22, 0
      %p56 = por %p54, %p55
      %s57 = ssub.s32 %s23, %s35
      %p58 = scmp.eq.s32.totalorder %s57, 0
      %s60 = sadd.s32 %s59, 1
      %s61 = scalar_select %p58, %s59, %s60
      %p64 = pneg %p58
      %p65 = scmp.eq.s32.totalorder %s16, 1
      %p66 = por %p64, %p65
      %p67 = scmp.ne.s32.totalorder %s59, %s62
      %p68 = scmp.eq.s32.totalorder %s16, 0
      %p69 = por %p67, %p68
      %p70 = scmp.ne.s32.totalorder %s59, %s62
      %p71 = scmp.eq.s32.totalorder %s21, 1
      %p72 = por %p70, %p71
      %p73 = scmp.ne.s32.totalorder %s62, %s63
      %p74 = scmp.eq.s32.totalorder %s21, 0
      %p75 = por %p73, %p74
      %p76 = scmp.ne.s32.totalorder %s62, %s63
      %p77 = scmp.eq.s32.totalorder %s22, 1
      %p78 = por %p76, %p77
      %p80 = scmp.ne.s32.totalorder %s63, %s79
      %p81 = scmp.eq.s32.totalorder %s22, 0
      %p82 = por %p80, %p81
      %s83 = ssub.s32 %s23, %s35
      %p84 = scmp.eq.s32.totalorder %s83, 0
      %s86 = sadd.s32 %s85, 1
      %s87 = scalar_select %p84, %s85, %s86
      %p90 = pneg %p84
      %p91 = scmp.eq.s32.totalorder %s16, 1
      %p92 = por %p90, %p91
      %p93 = scmp.ne.s32.totalorder %s85, %s88
      %p94 = scmp.eq.s32.totalorder %s16, 0
      %p95 = por %p93, %p94
      %p96 = scmp.ne.s32.totalorder %s85, %s88
      %p97 = scmp.eq.s32.totalorder %s21, 1
      %p98 = por %p96, %p97
      %p99 = scmp.ne.s32.totalorder %s88, %s89
      %p100 = scmp.eq.s32.totalorder %s21, 0
      %p101 = por %p99, %p100
      %p102 = scmp.ne.s32.totalorder %s88, %s89
      %p103 = scmp.eq.s32.totalorder %s22, 1
      %p104 = por %p102, %p103
      %p106 = scmp.ne.s32.totalorder %s89, %s105
      %p107 = scmp.eq.s32.totalorder %s22, 0
      %p108 = por %p106, %p107
      %s109 = ssub.s32 %s24, %s31
      %s110 = ssub.s32 %s23, %s35
      %s111 = sor.u32 %s109, %s110
      %p112 = scmp.eq.s32.totalorder %s111, 0
      %s114 = sadd.s32 %s113, 1
      %s115 = scalar_select %p112, %s113, %s114
      %p118 = pneg %p112
      %p119 = scmp.eq.s32.totalorder %s16, 1
      %p120 = por %p118, %p119
      %p121 = scmp.ne.s32.totalorder %s113, %s116
      %p122 = scmp.eq.s32.totalorder %s16, 0
      %p123 = por %p121, %p122
      %p124 = scmp.ne.s32.totalorder %s113, %s116
      %p125 = scmp.eq.s32.totalorder %s21, 1
      %p126 = por %p124, %p125
      %p127 = scmp.ne.s32.totalorder %s116, %s117
      %p128 = scmp.eq.s32.totalorder %s21, 0
      %p129 = por %p127, %p128
      %p130 = scmp.ne.s32.totalorder %s116, %s117
      %p131 = scmp.eq.s32.totalorder %s22, 1
      %p132 = por %p130, %p131
      %p134 = scmp.ne.s32.totalorder %s117, %s133
      %p135 = scmp.eq.s32.totalorder %s22, 0
      %p136 = por %p134, %p135
      %p137 = scmp.le.s32.totalorder 1, %s16
      %p138 = scmp.lt.s32.totalorder %s16, 3
      %p139 = pnand %p137, %p138
      %p140 = pneg %p139
      // Predicated region
      $region9: #{tpu_custom_call.1} parent=5 // pred_check
        _
      $region10: #{tpu_custom_call.1} parent=5 // pred_check_branch
        %142 = sbr.rel (%p139) target = $region12
      $region11: #{tpu_custom_call.1} parent=5 // pred_region
        %s143 = ssub.s32 %s16, 1
        // Predicated region
        $region13: #{tpu_custom_call.1} parent=11 // pred_check
          %p144 = pneg %p49
        $region14: #{tpu_custom_call.1} parent=11 // pred_check_branch
          %146 = sbr.rel (%p144) target = $region16
        $region15: #{tpu_custom_call.1} parent=11 // pred_region
          %148 = vsyncadd [#allocation3], 0
          %s149 = sshll.u32 %s0, 4
          %s150 = int_to_ptr.hbm [resolvable:$true] %s149
          %s151 = sshll.u32 [#allocation2], 4
          %s152 = int_to_ptr.vmem [resolvable:$true] %s151
          %157 = dma.hbm_to_vmem [thread:$0]  %s150, 128, %s152, [#allocation3], 64, 64, 4
        $region16: #{tpu_custom_call.1} parent=11 // pred_fallthru
          _
      $region12: #{tpu_custom_call.1} parent=5 // pred_fallthru
        _
      %p158 = scmp.lt.s32.totalorder %s16, 2
      // Predicated region
      $region17: #{tpu_custom_call.1} parent=5 // pred_check
        %p159 = pneg %p158
      $region18: #{tpu_custom_call.1} parent=5 // pred_check_branch
        %161 = sbr.rel (%p159) target = $region20
      $region19: #{tpu_custom_call.1} parent=5 // pred_region
        // Predicated region
        $region21: #{tpu_custom_call.1} parent=19 // pred_check
          %p162 = pneg %p69
        $region22: #{tpu_custom_call.1} parent=19 // pred_check_branch
          %164 = sbr.rel (%p162) target = $region24
        $region23: #{tpu_custom_call.1} parent=19 // pred_region
          %s165 = sand.u32 %s16, 1
          %s166 = scalar_lea.sflag [#allocation6], %s165
          %s167 = sand.u32 %s59, 1
          %s168 = smul.addr %s167, 64
          %s169 = scalar_lea.vmem [#allocation5], %s168
          %171 = vsyncadd %s166, 0
          %s172 = smul.addr %s23, 4
          %s173 = scalar_lea.hbm %s1, %s172
          %s174 = sshll.u32 %s173, 4
          %s175 = int_to_ptr.hbm [resolvable:$true] %s174
          %s176 = sshll.u32 %s169, 4
          %s177 = int_to_ptr.vmem [resolvable:$true] %s176
          %182 = dma.hbm_to_vmem [thread:$0]  %s175, 1024, %s177, %s166, 128, 64, 4
        $region24: #{tpu_custom_call.1} parent=19 // pred_fallthru
          _
        // Predicated region
        $region25: #{tpu_custom_call.1} parent=19 // pred_check
          %p183 = pneg %p95
        $region26: #{tpu_custom_call.1} parent=19 // pred_check_branch
          %185 = sbr.rel (%p183) target = $region28
        $region27: #{tpu_custom_call.1} parent=19 // pred_region
          %s186 = sand.u32 %s16, 1
          %s187 = scalar_lea.sflag [#allocation6], %s186
          %s188 = sand.u32 %s85, 1
          %s189 = scalar_lea.vmem [#allocation7], %s188
          %191 = vsyncadd %s187, 0
          %s192 = scalar_lea.hbm %s2, %s23
          %s194 = sshll.u32 %s192, 4
          %s195 = int_to_ptr.hbm [resolvable:$true] %s194
          %s196 = sshll.u32 %s189, 4
          %s197 = int_to_ptr.vmem [resolvable:$true] %s196
          %199 = dma.hbm_to_vmem [thread:$0]  %s195, 16, %s197, %s187
        $region28: #{tpu_custom_call.1} parent=19 // pred_fallthru
          _
      $region20: #{tpu_custom_call.1} parent=5 // pred_fallthru
        _
      %p200 = scmp.le.s32.totalorder 1, %s16
      %p201 = scmp.lt.s32.totalorder %s16, 3
      %p202 = pnand %p200, %p201
      %p203 = pneg %p202
      // Predicated region
      $region29: #{tpu_custom_call.1} parent=5 // pred_check
        _
      $region30: #{tpu_custom_call.1} parent=5 // pred_check_branch
        %205 = sbr.rel (%p202) target = $region32
      $region31: #{tpu_custom_call.1} parent=5 // pred_region
        %s206 = ssub.s32 %s16, 1
        // Predicated region
        $region33: #{tpu_custom_call.1} parent=31 // pred_check
          %p207 = pneg %p49
        $region34: #{tpu_custom_call.1} parent=31 // pred_check_branch
          %209 = sbr.rel (%p207) target = $region36
        $region35: #{tpu_custom_call.1} parent=31 // pred_region
          %211 = dma.done [#allocation3], 128
        $region36: #{tpu_custom_call.1} parent=31 // pred_fallthru
          _
        %s212 = sand.u32 %s21, 1
        %s213 = scalar_lea.sflag [#allocation6], %s212
        %s214 = sand.u32 %s62, 1
        %s215 = smul.addr %s214, 64
        %s216 = scalar_lea.vmem [#allocation5], %s215
        // Predicated region
        $region37: #{tpu_custom_call.1} parent=31 // pred_check
          %p217 = pneg %p75
        $region38: #{tpu_custom_call.1} parent=31 // pred_check_branch
          %219 = sbr.rel (%p217) target = $region40
        $region39: #{tpu_custom_call.1} parent=31 // pred_region
          %221 = dma.done %s213, 1024
        $region40: #{tpu_custom_call.1} parent=31 // pred_fallthru
          _
        %s222 = sand.u32 %s21, 1
        %s223 = scalar_lea.sflag [#allocation6], %s222
        %s224 = sand.u32 %s88, 1
        %s225 = scalar_lea.vmem [#allocation7], %s224
        // Predicated region
        $region41: #{tpu_custom_call.1} parent=31 // pred_check
          %p226 = pneg %p101
        $region42: #{tpu_custom_call.1} parent=31 // pred_check_branch
          %228 = sbr.rel (%p226) target = $region44
        $region43: #{tpu_custom_call.1} parent=31 // pred_region
          %230 = dma.done %s223, 16
        $region44: #{tpu_custom_call.1} parent=31 // pred_fallthru
          _
        %p231 = pneg %p49
        %p232 = pneg %p46
        %s233 = sand.u32 %s21, 1
        %s234 = scalar_lea.sflag [#allocation6], %s233
        %s235 = sand.u32 %s62, 1
        %s236 = smul.addr %s235, 64
        %s237 = scalar_lea.vmem [#allocation5], %s236
        %p238 = pneg %p75
        %p239 = pneg %p72
        %s240 = sand.u32 %s21, 1
        %s241 = scalar_lea.sflag [#allocation6], %s240
        %s242 = sand.u32 %s88, 1
        %s243 = scalar_lea.vmem [#allocation7], %s242
        %p244 = pneg %p101
        %p245 = pneg %p98
        %p246 = pneg %p129
        %p247 = pneg %p126
        %s248 = sand.u32 %s116, 1
        %s249 = scalar_lea.sflag [#allocation4], %s248
        %s250 = sand.u32 %s116, 1
        %s251 = smul.addr %s250, 16
        %s252 = scalar_lea.vmem [#allocation8], %s251
        %s253 = smul.u32 2, %s26
        %s254 = smul.u32 %s26, 16
        %s255 = sshra.s32 %s254, 3
        %s256 = sand.u32 %s254, 7
        %s257 = smul.addr %s255, 4
        %s258 = scalar_lea.vmem [#allocation2], %s257
        %v259 = vld [vmem:[%s258] sm:$0xf]
        %v260 = vld [vmem:[%s258 + $0x4] sm:$0xf]
        %v261 = vld [vmem:[%s216] sm:$0xf]
        %v262 = vld [vmem:[%s216 + $0x4] sm:$0xf]
        %v263 = vld [vmem:[%s216 + $0x8] sm:$0xf]
        %v264 = vld [vmem:[%s216 + $0xc] sm:$0xf]
        %v265 = vld [vmem:[%s216 + $0x10] sm:$0xf]
        %v266 = vld [vmem:[%s216 + $0x14] sm:$0xf]
        %v267 = vld [vmem:[%s216 + $0x18] sm:$0xf]
        %v268 = vld [vmem:[%s216 + $0x1c] sm:$0xf]
        %v269 = vld [vmem:[%s216 + $0x20] sm:$0xf]
        %v270 = vld [vmem:[%s216 + $0x24] sm:$0xf]
        %v271 = vld [vmem:[%s216 + $0x28] sm:$0xf]
        %v272 = vld [vmem:[%s216 + $0x2c] sm:$0xf]
        %v273 = vld [vmem:[%s216 + $0x30] sm:$0xf]
        %v274 = vld [vmem:[%s216 + $0x34] sm:$0xf]
        %v275 = vld [vmem:[%s216 + $0x38] sm:$0xf]
        %v276 = vld [vmem:[%s216 + $0x3c] sm:$0xf]
        %v277 = vld [vmem:[%s225] sm:$0x1]
        %v279 = vperm.slane %v277, 0
        %v283 = vunpack.c.l.b16 %v259
        %v284 = vunpack.c.l.b16 %v260
        %v285 = vpack.c.b16 %v284, %v283
        %v303 = vunpack.c.l.b16 %v261
        %v304 = vunpack.c.l.b16 %v262
        %v305 = vunpack.c.l.b16 %v263
        %v306 = vunpack.c.l.b16 %v264
        %v307 = vunpack.c.l.b16 %v265
        %v308 = vunpack.c.l.b16 %v266
        %v309 = vunpack.c.l.b16 %v267
        %v310 = vunpack.c.l.b16 %v268
        %v311 = vunpack.c.l.b16 %v269
        %v312 = vunpack.c.l.b16 %v270
        %v313 = vunpack.c.l.b16 %v271
        %v314 = vunpack.c.l.b16 %v272
        %v315 = vunpack.c.l.b16 %v273
        %v316 = vunpack.c.l.b16 %v274
        %v317 = vunpack.c.l.b16 %v275
        %v318 = vunpack.c.l.b16 %v276
        %v319 = vpack.c.b16 %v304, %v303
        %v320 = vpack.c.b16 %v306, %v305
        %v321 = vpack.c.b16 %v308, %v307
        %v322 = vpack.c.b16 %v310, %v309
        %v323 = vpack.c.b16 %v312, %v311
        %v324 = vpack.c.b16 %v314, %v313
        %v325 = vpack.c.b16 %v316, %v315
        %v326 = vpack.c.b16 %v318, %v317
        %335 = vmatpush.bf16.msra.mxu0 %v326
        %336 = vmatpush.bf16.msra.mxu0 %v325
        %337 = vmatpush.bf16.msra.mxu0 %v324
        %338 = vmatpush.bf16.msra.mxu0 %v323
        %339 = vmatpush.bf16.msra.mxu0 %v322
        %340 = vmatpush.bf16.msra.mxu0 %v321
        %341 = vmatpush.bf16.msra.mxu0 %v320
        %342 = vmatpush.bf16.msra.mxu0 %v319
        %343 = vmatmul.bf16.gmra.mxu0 %v285
        %v344 = vpop.f32.mrf.mxu0
        %v345 = vadd.f32 %v279, %v344
        %v346 = vpop.f32.mrf.mxu0
        %v347 = vadd.f32 %v279, %v346
        %348 = vdwg.mxu0
        %349 = vst [vmem:[%s252] sm:$0xff] %v345
        %350 = vst [vmem:[%s252 + $0x8] sm:$0xff] %v347
        %s351 = sand.u32 %s116, 1
        %s352 = scalar_lea.sflag [#allocation4], %s351
        %s353 = sand.u32 %s116, 1
        %s354 = smul.addr %s353, 16
        %s355 = scalar_lea.vmem [#allocation8], %s354
        // Predicated region
        $region45: #{tpu_custom_call.1} parent=31 // pred_check
          %p356 = pneg %p126
        $region46: #{tpu_custom_call.1} parent=31 // pred_check_branch
          %358 = sbr.rel (%p356) target = $region48
        $region47: #{tpu_custom_call.1} parent=31 // pred_region
          %s359 = smul.u32 2, %s26
          %361 = vsyncadd %s352, 0
          %s362 = smul.addr %s359, 2
          %s363 = sadd.s32 %s25, %s362
          %s364 = smul.addr %s363, 8
          %s365 = scalar_lea.hbm %s3, %s364
          %s366 = sshll.u32 %s355, 4
          %s367 = int_to_ptr.vmem [resolvable:$true] %s366
          %s368 = sshll.u32 %s365, 4
          %s369 = int_to_ptr.hbm [resolvable:$true] %s368
          %374 = dma.vmem_to_hbm [thread:$0]  %s367, 256, %s369, %s352, 128, 256, 8
        $region48: #{tpu_custom_call.1} parent=31 // pred_fallthru
          _
      $region32: #{tpu_custom_call.1} parent=5 // pred_fallthru
        _
      %p375 = scmp.le.s32.totalorder 2, %s16
      // Predicated region
      $region49: #{tpu_custom_call.1} parent=5 // pred_check
        %p376 = pneg %p375
      $region50: #{tpu_custom_call.1} parent=5 // pred_check_branch
        %378 = sbr.rel (%p376) target = $region52
      $region51: #{tpu_custom_call.1} parent=5 // pred_region
        %s379 = ssub.s32 %s16, 2
        // Predicated region
        $region53: #{tpu_custom_call.1} parent=51 // pred_check
          %p380 = pneg %p132
        $region54: #{tpu_custom_call.1} parent=51 // pred_check_branch
          %382 = sbr.rel (%p380) target = $region56
        $region55: #{tpu_custom_call.1} parent=51 // pred_region
          %s383 = sand.u32 %s117, 1
          %s384 = scalar_lea.sflag [#allocation4], %s383
          %s385 = sand.u32 %s117, 1
          %s386 = smul.addr %s385, 16
          %s387 = scalar_lea.vmem [#allocation8], %s386
          %389 = dma.done %s384, 256
        $region56: #{tpu_custom_call.1} parent=51 // pred_fallthru
          _
      $region52: #{tpu_custom_call.1} parent=5 // pred_fallthru
        _
    $region6: #{tpu_custom_call.1} parent=1 // loop_footer
      %s20 = sadd.s32 1, %s16
    $region7: #{tpu_custom_call.1} parent=1 // loop_footer_branch
      %15 = sbr.rel target = $region3
    $region8: #{tpu_custom_call.1} parent=1 // loop_exit
      _
    %390 = vsyncpa [#allocation3], 1
    %s391 = scalar_lea.sflag [#allocation3], 1
    %392 = vsyncpa %s391, 1
    %393 = vsyncpa [#allocation6], 1
    %s394 = scalar_lea.sflag [#allocation6], 1
    %395 = vsyncpa %s394, 1
    %396 = vsyncpa [#allocation4], 1
    %s397 = scalar_lea.sflag [#allocation4], 1
    %398 = vsyncpa %s397, 1

</llo_original>
